<compile_context>
chip_gen: v7x
topology: tpu7x:2x2x1
jax: 0.10.0
libtpu: 0.0.40
codegen_flags: <defaults>
</compile_context>

<pallas_src>
import functools

import jax
import jax.numpy as jnp
from jax import lax
from jax.experimental import pallas as pl
from jax.experimental.pallas import tpu as pltpu


def _round_up(x, m):
    return ((x + m - 1) // m) * m


def _resident_spec(block_shape, index_map):
    """BlockSpec for an operand whose index_map is constant across the grid.

    Single-buffer it (never refilled -> second pipeline buffer is dead VMEM).
    Falls back gracefully on Pallas versions without the pipeline_mode knob.
    """
    try:
        return pl.BlockSpec(block_shape, index_map, pipeline_mode=pl.Buffered(1))
    except (TypeError, ValueError, AttributeError):
        return pl.BlockSpec(block_shape, index_map)


def _tok_proj_kernel(x_ref, m_ref, w_ref, b_ref, y_ref, *,
                     num_tok_cols, fused_cls, matmul_dtype):
    # x_ref: (TM, H)   rows of last_hidden flattened over (batch, seq), native dtype
    # m_ref: (TM, 1)   per-row attention mask, f32
    # w_ref: (H, NP)   [W_tok^T | (W_cls^T if fused) | 0-pad], matmul_dtype, lane-dense
    # b_ref: (1, NP)   fused bias, f32
    # y_ref: (TM, NP)  lane-dense f32 output
    x = x_ref[...].astype(matmul_dtype)
    y = jnp.dot(x, w_ref[...], preferred_element_type=jnp.float32) + b_ref[...]
    m = m_ref[...]
    if fused_cls:
        # Token columns (< num_tok_cols) are masked per row; cls columns must
        # stay unmasked. Zero pad columns are unaffected either way.
        col = lax.broadcasted_iota(jnp.int32, y.shape, dimension=1)
        scale = jnp.where(col < num_tok_cols, m, 1.0)
    else:
        # Output holds only token columns (+ zero padding): row mask suffices.
        scale = m
    y_ref[...] = y * scale


def _cls_proj_kernel(x_ref, w_ref, b_ref, y_ref, *, matmul_dtype):
    # Tiny (B, H) @ (H, NPc) projection for the B CLS rows only.
    x = x_ref[...].astype(matmul_dtype)
    y_ref[...] = jnp.dot(x, w_ref[...], preferred_element_type=jnp.float32) + b_ref[...]


def lsh_encoder_forward(last_hidden, attention_mask, params, *,
                        tile_m=1024, matmul_dtype=jnp.bfloat16):
    """Pallas implementation of LSHEncoder.forward's post-transformer compute.

    last_hidden:    (B, S, H) f32 or bf16 -- outputs.hidden_states[-1] (not upcast here)
    attention_mask: (B, S)    int32
    params: dict with w_tok (P, H), b_tok (P,), w_cls (C, H), b_cls (C,)
    """
    B, S, H = last_hidden.shape
    P = params["w_tok"].shape[0]
    C = params["w_cls"].shape[0]

    NP_tok = 128 * pl.cdiv(P, 128)
    NP_fused = 128 * pl.cdiv(P + C, 128)
    # Fuse cls into the per-row matmul only when it costs zero extra lanes.
    fuse_cls = (NP_fused == NP_tok)
    NP = NP_fused if fuse_cls else NP_tok

    # Padded projection weights in the matmul dtype (bf16 by default) and f32
    # bias. Tiny; under jit these setup ops are fused/negligible -- hoist them
    # (pre-build padded weights once) if calling eagerly in a tight loop.
    w = jnp.zeros((H, NP), matmul_dtype)
    w = w.at[:, :P].set(params["w_tok"].T.astype(matmul_dtype))
    b = jnp.zeros((1, NP), jnp.float32)
    b = b.at[:, :P].set(params["b_tok"].astype(jnp.float32))
    if fuse_cls:
        w = w.at[:, P:P + C].set(params["w_cls"].T.astype(matmul_dtype))
        b = b.at[:, P:P + C].set(params["b_cls"].astype(jnp.float32))

    M = B * S
    x = last_hidden.reshape(M, H)                       # free reshape, no slice/copy
    m_rows = attention_mask.astype(jnp.float32).reshape(M, 1)

    # M tile: multiple of 8, capped at ~M/2 so grid_m >= 2 whenever M allows it
    # (keeps both v7x TensorCores busy via the "parallel" axis). 1024 rows by
    # default amortizes the ~0.35us per-grid-step pipeline overhead; the
    # double-buffered working set (x tile + out tile) stays far below 48 MiB
    # for any realistic H, so it fits every generation's VMEM.
    tm = min(int(tile_m), _round_up(M, 8), max(8, _round_up(pl.cdiv(M, 2), 8)))
    tm = max(8, _round_up(tm, 8))
    grid_m = pl.cdiv(M, tm)

    kernel = functools.partial(_tok_proj_kernel, num_tok_cols=P,
                               fused_cls=fuse_cls, matmul_dtype=matmul_dtype)

    y = pl.pallas_call(
        kernel,
        out_shape=jax.ShapeDtypeStruct((M, NP), jnp.float32),
        grid_spec=pltpu.PrefetchScalarGridSpec(
            num_scalar_prefetch=0,
            grid=(grid_m,),
            in_specs=[
                pl.BlockSpec((tm, H), lambda i: (i, 0)),      # hidden rows (streamed)
                pl.BlockSpec((tm, 1), lambda i: (i, 0)),      # per-row mask
                _resident_spec((H, NP), lambda i: (0, 0)),    # weights (resident, 1-buffered)
                _resident_spec((1, NP), lambda i: (0, 0)),    # bias    (resident, 1-buffered)
            ],
            out_specs=pl.BlockSpec((tm, NP), lambda i: (i, 0)),
        ),
        compiler_params=pltpu.CompilerParams(
            dimension_semantics=("parallel",),                # shard M tiles across TCs
            vmem_limit_bytes=48 * 1024 * 1024,                # <= v7x 64 MiB physical
        ),
    )(x, m_rows, w, b)

    y3 = y.reshape(B, S, NP)
    # Token columns come first and are lane-dense; when P is a multiple of 128
    # (typical production config) ":P" is a no-op view and only the cheap row
    # slice [1:] remains (no column-strided XLA pass over the big output).
    token_dense_repr = y3[:, 1:, :P]

    if fuse_cls:
        cls_repr = y3[:, 0, P:P + C]                     # B rows only -> tiny slice
    else:
        # cls is only needed for the B CLS rows; fusing it would write (and
        # compute) an extra 128-lane group for every one of the M rows.
        NPc = 128 * pl.cdiv(C, 128)
        wc = jnp.zeros((H, NPc), matmul_dtype)
        wc = wc.at[:, :C].set(params["w_cls"].T.astype(matmul_dtype))
        bc = jnp.zeros((1, NPc), jnp.float32)
        bc = bc.at[:, :C].set(params["b_cls"].astype(jnp.float32))
        x_cls = last_hidden[:, 0, :]                     # (B, H) tiny gather
        cls_full = pl.pallas_call(
            functools.partial(_cls_proj_kernel, matmul_dtype=matmul_dtype),
            out_shape=jax.ShapeDtypeStruct((B, NPc), jnp.float32),
        )(x_cls, wc, bc)
        cls_repr = cls_full[:, :C]

    # Tiny reduction; cheaper as plain JAX than a per-step kernel DMA.
    num_token = jnp.sum(attention_mask[:, 1:].astype(jnp.int32), axis=1)

    return {
        "token_dense_repr": token_dense_repr,
        "cls_repr": cls_repr,
        "num_token": num_token,
    }


def _reference_forward(last_hidden, attention_mask, params):
    lh = last_hidden.astype(jnp.float32)
    hiddens = lh[:, 1:, :]
    mask = attention_mask[:, 1:]
    tok = hiddens @ params["w_tok"].T.astype(jnp.float32) + params["b_tok"].astype(jnp.float32)
    tok = tok * mask[:, :, None].astype(jnp.float32)
    cls = lh[:, 0, :] @ params["w_cls"].T.astype(jnp.float32) + params["b_cls"].astype(jnp.float32)
    return {
        "token_dense_repr": tok.astype(jnp.float32),
        "cls_repr": cls.astype(jnp.float32),
        "num_token": jnp.sum(mask, axis=1).astype(jnp.int32),
    }


if __name__ == "__main__":
    # Small synthetic shapes consistent with the module:
    # batch=2, seq=9 ([CLS] + 8 tokens), hidden_size=32.
    B, S, H = 2, 9, 32
    key = jax.random.PRNGKey(0)
    k_h1, k_h2, k_w1, k_b1, k_w2, k_b2, k_w3, k_b3, k_w4, k_b4 = jax.random.split(key, 10)

    attention_mask = jnp.array(
        [[1] * S,                      # fully valid
         [1] * (S - 3) + [0] * 3],     # last 3 positions padded
        dtype=jnp.int32)

    def make_params(kw1, kb1, kw2, kb2, P, C):
        return {
            "w_tok": 0.02 * jax.random.normal(kw1, (P, H), dtype=jnp.float32),
            "b_tok": 0.01 * jax.random.normal(kb1, (P,), dtype=jnp.float32),
            "w_cls": 0.02 * jax.random.normal(kw2, (C, H), dtype=jnp.float32),
            "b_cls": 0.01 * jax.random.normal(kb2, (C,), dtype=jnp.float32),
        }

    # Case 1: fused-cls path (P + C fit in one 128-lane group), f32 hidden states.
    P1, C1 = 16, 16
    lh1 = jax.random.normal(k_h1, (B, S, H), dtype=jnp.float32)
    params1 = make_params(k_w1, k_b1, k_w2, k_b2, P1, C1)
    out1 = lsh_encoder_forward(lh1, attention_mask, params1)
    jax.block_until_ready(out1)
    ref1 = _reference_forward(lh1, attention_mask, params1)
    assert out1["token_dense_repr"].shape == (B, S - 1, P1)
    assert out1["cls_repr"].shape == (B, C1)
    assert out1["num_token"].shape == (B,)
    assert jnp.allclose(out1["token_dense_repr"], ref1["token_dense_repr"], atol=1e-2, rtol=1e-2)
    assert jnp.allclose(out1["cls_repr"], ref1["cls_repr"], atol=1e-2, rtol=1e-2)
    assert jnp.array_equal(out1["num_token"], ref1["num_token"])

    # Case 2: non-fused path (cls would add a lane group) with bf16 hidden
    # states straight from a bf16 transformer (no upcast in the wrapper).
    P2, C2 = 96, 64
    lh2 = jax.random.normal(k_h2, (B, S, H), dtype=jnp.float32).astype(jnp.bfloat16)
    params2 = make_params(k_w3, k_b3, k_w4, k_b4, P2, C2)
    out2 = lsh_encoder_forward(lh2, attention_mask, params2)
    jax.block_until_ready(out2)
    ref2 = _reference_forward(lh2, attention_mask, params2)
    assert out2["token_dense_repr"].shape == (B, S - 1, P2)
    assert out2["cls_repr"].shape == (B, C2)
    assert jnp.allclose(out2["token_dense_repr"], ref2["token_dense_repr"], atol=2e-2, rtol=2e-2)
    assert jnp.allclose(out2["cls_repr"], ref2["cls_repr"], atol=2e-2, rtol=2e-2)
    assert jnp.array_equal(out2["num_token"], ref2["num_token"])

    print("KERNEL_OK")
</pallas_src>

<mosaic_0001>
module attributes {stable_mosaic.version = 11 : i64} {
  func.func @_tok_proj_kernel(%arg0: i32, %arg1: memref<16x32xf32, #tpu.memory_space<vmem>>, %arg2: memref<16x1xf32, #tpu.memory_space<vmem>>, %arg3: memref<32x128xbf16, #tpu.memory_space<vmem>>, %arg4: memref<1x128xf32, #tpu.memory_space<vmem>>, %arg5: memref<16x128xf32, #tpu.memory_space<vmem>>) attributes {dimension_semantics = [#tpu.dimension_semantics<parallel>], iteration_bounds = array<i64: 2>, scalar_prefetch = 0 : i64, scratch_operands = 0 : i64, tpu.core_type = #tpu.core_type<tc>, window_params = [{transform_indices = @transform_0, window_bounds = array<i64: 16, 32>}, {transform_indices = @transform_1, window_bounds = array<i64: 16, 1>}, {pipeline_mode = #tpu.pipeline_mode<synchronous>, transform_indices = @transform_2, window_bounds = array<i64: 32, 128>}, {pipeline_mode = #tpu.pipeline_mode<synchronous>, transform_indices = @transform_3, window_bounds = array<i64: 1, 128>}, {transform_indices = @transform_4, window_bounds = array<i64: 16, 128>}]} {
    %c0 = arith.constant 0 : index
    %c0_0 = arith.constant 0 : index
    %0 = vector.load %arg1[%c0, %c0_0] : memref<16x32xf32, #tpu.memory_space<vmem>>, vector<16x32xf32>
    %1 = arith.truncf %0 : vector<16x32xf32> to vector<16x32xbf16>
    %c0_1 = arith.constant 0 : index
    %c0_2 = arith.constant 0 : index
    %2 = vector.load %arg3[%c0_1, %c0_2] : memref<32x128xbf16, #tpu.memory_space<vmem>>, vector<32x128xbf16>
    %cst = arith.constant dense<0.000000e+00> : vector<16x128xf32>
    %3 = tpu.matmul %1, %2, %cst {dimension_numbers = #tpu.dot_dimension_numbers<[1], [0], [0], [1], [0, 0, 1, 1], [], []>} : vector<16x32xbf16>, vector<32x128xbf16>, vector<16x128xf32> -> vector<16x128xf32>
    %c0_3 = arith.constant 0 : index
    %c0_4 = arith.constant 0 : index
    %4 = vector.load %arg4[%c0_3, %c0_4] : memref<1x128xf32, #tpu.memory_space<vmem>>, vector<1x128xf32>
    %5 = vector.broadcast %4 : vector<1x128xf32> to vector<16x128xf32>
    %6 = arith.addf %3, %5 : vector<16x128xf32>
    %c0_5 = arith.constant 0 : index
    %c0_6 = arith.constant 0 : index
    %7 = vector.load %arg2[%c0_5, %c0_6] : memref<16x1xf32, #tpu.memory_space<vmem>>, vector<16x1xf32>
    %8 = tpu.iota {dimensions = array<i32: 1>} : vector<16x128xi32>
    %c16_i32 = arith.constant 16 : i32
    %9 = vector.broadcast %c16_i32 : i32 to vector<16x128xi32>
    %10 = arith.cmpi slt, %8, %9 : vector<16x128xi32>
    %cst_7 = arith.constant 1.000000e+00 : f32
    %11 = vector.shape_cast %7 : vector<16x1xf32> to vector<16x1xf32>
    %12 = vector.broadcast %11 : vector<16x1xf32> to vector<16x128xf32>
    %13 = vector.broadcast %cst_7 : f32 to vector<16x128xf32>
    %14 = arith.select %10, %12, %13 : vector<16x128xi1>, vector<16x128xf32>
    %15 = arith.mulf %6, %14 : vector<16x128xf32>
    %c0_8 = arith.constant 0 : index
    %c0_9 = arith.constant 0 : index
    %16 = vector.load %arg5[%c0_8, %c0_9] : memref<16x128xf32, #tpu.memory_space<vmem>>, vector<16x128xf32>
    tpu.vector_store %arg5[%c0_8, %c0_9], %15 {strides = array<i32>} : memref<16x128xf32, #tpu.memory_space<vmem>>, vector<16x128xf32>,
    return
  }
  func.func @transform_0(%arg0: i32) -> (i32, i32) {
    %c0_i32 = arith.constant 0 : i32
    %c0_i32_0 = arith.constant 0 : i32
    return %arg0, %c0_i32 : i32, i32
  }
  func.func @transform_1(%arg0: i32) -> (i32, i32) {
    %c0_i32 = arith.constant 0 : i32
    %c0_i32_0 = arith.constant 0 : i32
    return %arg0, %c0_i32 : i32, i32
  }
  func.func @transform_2(%arg0: i32) -> (i32, i32) {
    %c0_i32 = arith.constant 0 : i32
    %c0_i32_0 = arith.constant 0 : i32
    %c0_i32_1 = arith.constant 0 : i32
    return %c0_i32, %c0_i32_0 : i32, i32
  }
  func.func @transform_3(%arg0: i32) -> (i32, i32) {
    %c0_i32 = arith.constant 0 : i32
    %c0_i32_0 = arith.constant 0 : i32
    %c0_i32_1 = arith.constant 0 : i32
    return %c0_i32, %c0_i32_0 : i32, i32
  }
  func.func @transform_4(%arg0: i32) -> (i32, i32) {
    %c0_i32 = arith.constant 0 : i32
    %c0_i32_0 = arith.constant 0 : i32
    return %arg0, %c0_i32 : i32, i32
  }
}

</mosaic_0001>

<llo_original>
// kernel: tpu_custom_call.1
$region0: #{tpu_custom_call.1}
  #allocation0 [shape = 'u32[]', space=smem, size = 0x4, offset = 0x4, fixed_abs, tag = 'smem constant byte address 0x4 - core index']
  #allocation1 [shape = 'u32[144,128]{1,0:T(1,128)}', space=vmem, size = 0x12000, scoped, tag = 'internal scratch']
  %s0 = inlined_call_operand.vmem [shape: f32[18,32], index: 0, kind: input, shape index: {}]
  %s1 = inlined_call_operand.vmem [shape: f32[18,1], index: 1, kind: input, shape index: {}]
  %s2 = inlined_call_operand.hbm [shape: bf16[32,128], index: 2, kind: input, shape index: {}]
  %s3 = inlined_call_operand.vmem [shape: f32[1,128], index: 3, kind: input, shape index: {}]
  %s4 = inlined_call_operand.hbm [shape: f32[18,128], index: 4, kind: output, shape index: {}]
  %s5 = sld [smem:[#allocation0]]
  $region53: #{tpu_custom_call.1} parent=0
    _
  %s7 = ssub.s32 1, %s5
  %s8 = scalar_select 0, %s7, %s5
  $region1: #{tpu_custom_call.1} parent=0
    #allocation2 [shape = 'u8[8192]{0}', space=vmem, size = 0x2000, scoped, tag = 'input window, operand 2, single buffered']
    #allocation3 [shape = 's32[2]{0}', space=sflag, size = 0x8, scoped, tag = 'scoped memory for tpu_custom_call.1']
    #allocation4 [shape = 's32[2]{0}', space=sflag, size = 0x8, scoped, tag = 'scoped memory for tpu_custom_call.1']
    #allocation5 [shape = 'u8[16384]{0}', space=vmem, size = 0x4000, scoped, tag = 'output window, operand 0']
    %9 = vsyncpa [#allocation3], 0
    %10 = vsyncpa [#allocation4], 0
    %s11 = scalar_lea.sflag [#allocation4], 1
    %12 = vsyncpa %s11, 0
    loop: start=0, step=1, limit=4
    $region2: #{tpu_custom_call.1} parent=1 // loop_pre_header
      _
    $region3: #{tpu_custom_call.1} parent=1 // loop_header
      %s14 = sphi 0, %s18
      %p15 = scmp.ge.s32.totalorder %s14, 4
      %s24 = sphi 0, %s26
      %s27 = sphi 0, %s24
      %s28 = sphi 0, %s27
      %s44 = sphi 0, %s28
      %s50 = sphi 0, %s52
      %s53 = sphi 0, %s50
      %s54 = sphi 0, %s53
      %s70 = sphi 0, %s54
      %s74 = sphi 0, %s74
      %s76 = sphi 0, %s74
      %s77 = sphi 0, %s76
      %s91 = sphi 0, %s77
      %s95 = sphi 0, %s95
      %s97 = sphi 0, %s95
      %s98 = sphi 0, %s97
      %s112 = sphi 0, %s98
      %s118 = sphi 0, %s120
      %s121 = sphi 0, %s118
      %s122 = sphi 0, %s121
      %s138 = sphi 0, %s122
    $region4: #{tpu_custom_call.1} parent=1 // loop_header_branch
      %17 = sbr.rel (%p15) target = $region8
    $region5: #{tpu_custom_call.1} parent=1 // loop_body
      %s19 = ssub.s32 %s14, 1
      %s20 = ssub.s32 %s14, 2
      %s21 = sadd.s32 %s14, 1
      %s22 = ssub.s32 %s14, %s21
      %p23 = scmp.eq.s32.totalorder %s22, 0
      %s25 = sadd.s32 %s24, 1
      %s26 = scalar_select %p23, %s24, %s25
      %p29 = pneg %p23
      %p30 = scmp.eq.s32.totalorder %s14, 1
      %p31 = por %p29, %p30
      %p32 = scmp.ne.s32.totalorder %s24, %s27
      %p33 = scmp.eq.s32.totalorder %s14, 0
      %p34 = por %p32, %p33
      %p35 = scmp.ne.s32.totalorder %s24, %s27
      %p36 = scmp.eq.s32.totalorder %s19, 1
      %p37 = por %p35, %p36
      %p38 = scmp.ne.s32.totalorder %s27, %s28
      %p39 = scmp.eq.s32.totalorder %s19, 0
      %p40 = por %p38, %p39
      %p41 = scmp.ne.s32.totalorder %s27, %s28
      %p42 = scmp.eq.s32.totalorder %s20, 1
      %p43 = por %p41, %p42
      %p45 = scmp.ne.s32.totalorder %s28, %s44
      %p46 = scmp.eq.s32.totalorder %s20, 0
      %p47 = por %p45, %p46
      %s48 = ssub.s32 %s14, %s21
      %p49 = scmp.eq.s32.totalorder %s48, 0
      %s51 = sadd.s32 %s50, 1
      %s52 = scalar_select %p49, %s50, %s51
      %p55 = pneg %p49
      %p56 = scmp.eq.s32.totalorder %s14, 1
      %p57 = por %p55, %p56
      %p58 = scmp.ne.s32.totalorder %s50, %s53
      %p59 = scmp.eq.s32.totalorder %s14, 0
      %p60 = por %p58, %p59
      %p61 = scmp.ne.s32.totalorder %s50, %s53
      %p62 = scmp.eq.s32.totalorder %s19, 1
      %p63 = por %p61, %p62
      %p64 = scmp.ne.s32.totalorder %s53, %s54
      %p65 = scmp.eq.s32.totalorder %s19, 0
      %p66 = por %p64, %p65
      %p67 = scmp.ne.s32.totalorder %s53, %s54
      %p68 = scmp.eq.s32.totalorder %s20, 1
      %p69 = por %p67, %p68
      %p71 = scmp.ne.s32.totalorder %s54, %s70
      %p72 = scmp.eq.s32.totalorder %s20, 0
      %p73 = por %p71, %p72
      %s75 = sadd.s32 %s74, 1
      %p78 = scmp.eq.s32.totalorder %s14, 1
      %p79 = scmp.ne.s32.totalorder %s74, %s76
      %p80 = scmp.eq.s32.totalorder %s14, 0
      %p81 = por %p79, %p80
      %p82 = scmp.ne.s32.totalorder %s74, %s76
      %p83 = scmp.eq.s32.totalorder %s19, 1
      %p84 = por %p82, %p83
      %p85 = scmp.ne.s32.totalorder %s76, %s77
      %p86 = scmp.eq.s32.totalorder %s19, 0
      %p87 = por %p85, %p86
      %p88 = scmp.ne.s32.totalorder %s76, %s77
      %p89 = scmp.eq.s32.totalorder %s20, 1
      %p90 = por %p88, %p89
      %p92 = scmp.ne.s32.totalorder %s77, %s91
      %p93 = scmp.eq.s32.totalorder %s20, 0
      %p94 = por %p92, %p93
      %s96 = sadd.s32 %s95, 1
      %p99 = scmp.eq.s32.totalorder %s14, 1
      %p100 = scmp.ne.s32.totalorder %s95, %s97
      %p101 = scmp.eq.s32.totalorder %s14, 0
      %p102 = por %p100, %p101
      %p103 = scmp.ne.s32.totalorder %s95, %s97
      %p104 = scmp.eq.s32.totalorder %s19, 1
      %p105 = por %p103, %p104
      %p106 = scmp.ne.s32.totalorder %s97, %s98
      %p107 = scmp.eq.s32.totalorder %s19, 0
      %p108 = por %p106, %p107
      %p109 = scmp.ne.s32.totalorder %s97, %s98
      %p110 = scmp.eq.s32.totalorder %s20, 1
      %p111 = por %p109, %p110
      %p113 = scmp.ne.s32.totalorder %s98, %s112
      %p114 = scmp.eq.s32.totalorder %s20, 0
      %p115 = por %p113, %p114
      %s116 = ssub.s32 %s14, %s21
      %p117 = scmp.eq.s32.totalorder %s116, 0
      %s119 = sadd.s32 %s118, 1
      %s120 = scalar_select %p117, %s118, %s119
      %p123 = pneg %p117
      %p124 = scmp.eq.s32.totalorder %s14, 1
      %p125 = por %p123, %p124
      %p126 = scmp.ne.s32.totalorder %s118, %s121
      %p127 = scmp.eq.s32.totalorder %s14, 0
      %p128 = por %p126, %p127
      %p129 = scmp.ne.s32.totalorder %s118, %s121
      %p130 = scmp.eq.s32.totalorder %s19, 1
      %p131 = por %p129, %p130
      %p132 = scmp.ne.s32.totalorder %s121, %s122
      %p133 = scmp.eq.s32.totalorder %s19, 0
      %p134 = por %p132, %p133
      %p135 = scmp.ne.s32.totalorder %s121, %s122
      %p136 = scmp.eq.s32.totalorder %s20, 1
      %p137 = por %p135, %p136
      %p139 = scmp.ne.s32.totalorder %s122, %s138
      %p140 = scmp.eq.s32.totalorder %s20, 0
      %p141 = por %p139, %p140
      %p142 = scmp.le.s32.totalorder 1, %s14
      %p143 = scmp.lt.s32.totalorder %s14, 3
      %p144 = pnand %p142, %p143
      %p145 = pneg %p144
      // Predicated region
      $region9: #{tpu_custom_call.1} parent=5 // pred_check
        _
      $region10: #{tpu_custom_call.1} parent=5 // pred_check_branch
        %147 = sbr.rel (%p144) target = $region12
      $region11: #{tpu_custom_call.1} parent=5 // pred_region
        %s148 = ssub.s32 %s14, 1
        // Predicated region
        $region13: #{tpu_custom_call.1} parent=11 // pred_check
          %p149 = pneg %p87
        $region14: #{tpu_custom_call.1} parent=11 // pred_check_branch
          %151 = sbr.rel (%p149) target = $region16
        $region15: #{tpu_custom_call.1} parent=11 // pred_region
          %s153 = ssub.s32 256, 256
          %154 = vsyncadd [#allocation3], %s153
          %s155 = sshll.u32 [#allocation2], 4
          %s156 = int_to_ptr.vmem [resolvable:$true] %s155
          %161 = dma.hbm_to_vmem [thread:$0]  %s2, 256, %s156, [#allocation3], 64, 64, 4
        $region16: #{tpu_custom_call.1} parent=11 // pred_fallthru
          _
        // Predicated region
        $region17: #{tpu_custom_call.1} parent=11 // pred_check
          %p162 = pneg %p108
        $region18: #{tpu_custom_call.1} parent=11 // pred_check_branch
          %164 = sbr.rel (%p162) target = $region20
        $region19: #{tpu_custom_call.1} parent=11 // pred_region
          _
        $region20: #{tpu_custom_call.1} parent=11 // pred_fallthru
          _
      $region12: #{tpu_custom_call.1} parent=5 // pred_fallthru
        _
      %p165 = scmp.lt.s32.totalorder %s14, 2
      // Predicated region
      $region21: #{tpu_custom_call.1} parent=5 // pred_check
        %p166 = pneg %p165
      $region22: #{tpu_custom_call.1} parent=5 // pred_check_branch
        %168 = sbr.rel (%p166) target = $region24
      $region23: #{tpu_custom_call.1} parent=5 // pred_region
        // Predicated region
        $region25: #{tpu_custom_call.1} parent=23 // pred_check
          %p169 = pneg %p34
        $region26: #{tpu_custom_call.1} parent=23 // pred_check_branch
          %171 = sbr.rel (%p169) target = $region28
        $region27: #{tpu_custom_call.1} parent=23 // pred_region
          %s172 = smul.u32 2, %s14
          %s173 = ssub.s32 3, %s172
          %p174 = scmp.lt.s32.totalorder %s173, 2
          %s175 = scalar_select %p174, %s173, 2
          %s176 = smul.u32 128, %s175
          %p177 = scmp.lt.s32.totalorder %s172, 2
          %s178 = scalar_select %p177, %s172, 2
          %s179 = smul.addr %s178, 8
          %s180 = scalar_lea.vmem %s0, %s179
          %s181 = smul.u32 2, %s14
          %s182 = ssub.s32 3, %s181
          %p183 = scmp.lt.s32.totalorder %s182, 2
          %s184 = scalar_select %p183, %s182, 2
          %s185 = smul.u32 128, %s184
        $region28: #{tpu_custom_call.1} parent=23 // pred_fallthru
          _
        // Predicated region
        $region29: #{tpu_custom_call.1} parent=23 // pred_check
          %p186 = pneg %p60
        $region30: #{tpu_custom_call.1} parent=23 // pred_check_branch
          %188 = sbr.rel (%p186) target = $region32
        $region31: #{tpu_custom_call.1} parent=23 // pred_region
          %s189 = smul.u32 2, %s14
          %s190 = ssub.s32 3, %s189
          %p191 = scmp.lt.s32.totalorder %s190, 2
          %s192 = scalar_select %p191, %s190, 2
          %s193 = smul.u32 128, %s192
          %p194 = scmp.lt.s32.totalorder %s189, 2
          %s195 = scalar_select %p194, %s189, 2
          %s196 = smul.addr %s195, 8
          %s197 = scalar_lea.vmem %s1, %s196
          %s198 = smul.u32 2, %s14
          %s199 = ssub.s32 3, %s198
          %p200 = scmp.lt.s32.totalorder %s199, 2
          %s201 = scalar_select %p200, %s199, 2
          %s202 = smul.u32 128, %s201
        $region32: #{tpu_custom_call.1} parent=23 // pred_fallthru
          _
      $region24: #{tpu_custom_call.1} parent=5 // pred_fallthru
        _
      %p203 = scmp.le.s32.totalorder 1, %s14
      %p204 = scmp.lt.s32.totalorder %s14, 3
      %p205 = pnand %p203, %p204
      %p206 = pneg %p205
      // Predicated region
      $region33: #{tpu_custom_call.1} parent=5 // pred_check
        _
      $region34: #{tpu_custom_call.1} parent=5 // pred_check_branch
        %208 = sbr.rel (%p205) target = $region36
      $region35: #{tpu_custom_call.1} parent=5 // pred_region
        %s209 = ssub.s32 %s14, 1
        // Predicated region
        $region37: #{tpu_custom_call.1} parent=35 // pred_check
          %p210 = pneg %p87
        $region38: #{tpu_custom_call.1} parent=35 // pred_check_branch
          %212 = sbr.rel (%p210) target = $region40
        $region39: #{tpu_custom_call.1} parent=35 // pred_region
          %213 = dma.done [#allocation3], 256
        $region40: #{tpu_custom_call.1} parent=35 // pred_fallthru
          _
        %s214 = smul.u32 2, %s19
        %s215 = ssub.s32 3, %s214
        %p216 = scmp.lt.s32.totalorder %s215, 2
        %s217 = scalar_select %p216, %s215, 2
        %s218 = smul.u32 128, %s217
        %p219 = scmp.lt.s32.totalorder %s214, 2
        %s220 = scalar_select %p219, %s214, 2
        %s221 = smul.addr %s220, 8
        %s222 = scalar_lea.vmem %s0, %s221
        %p223 = pneg %p40
        %p224 = pneg %p37
        %s225 = smul.u32 2, %s19
        %s226 = ssub.s32 3, %s225
        %p227 = scmp.lt.s32.totalorder %s226, 2
        %s228 = scalar_select %p227, %s226, 2
        %s229 = smul.u32 128, %s228
        %p230 = scmp.lt.s32.totalorder %s225, 2
        %s231 = scalar_select %p230, %s225, 2
        %s232 = smul.addr %s231, 8
        %s233 = scalar_lea.vmem %s1, %s232
        %p234 = pneg %p66
        %p235 = pneg %p63
        %p236 = pneg %p87
        %p237 = pneg %p84
        %p238 = pneg %p108
        %p239 = pneg %p105
        %p240 = pneg %p134
        %p241 = pneg %p131
        %s242 = sand.u32 %s121, 1
        %s243 = scalar_lea.sflag [#allocation4], %s242
        %s244 = sand.u32 %s121, 1
        %s245 = smul.addr %s244, 16
        %s246 = scalar_lea.vmem [#allocation5], %s245
        %s247 = smul.u32 2, %s19
        %s248 = ssub.s32 3, %s247
        %p249 = scmp.lt.s32.totalorder %s248, 2
        %s250 = scalar_select %p249, %s248, 2
        %s251 = smul.u32 128, %s250
        %p252 = scmp.lt.s32.totalorder %s247, 2
        %s253 = scalar_select %p252, %s247, 2
        %s254 = smul.addr %s253, 8
        %s255 = scalar_lea.vmem %s0, %s254
        %s256 = smul.u32 2, %s19
        %s257 = ssub.s32 3, %s256
        %p258 = scmp.lt.s32.totalorder %s257, 2
        %s259 = scalar_select %p258, %s257, 2
        %s260 = smul.u32 128, %s259
        %s261 = smul.u32 2, %s19
        %s262 = ssub.s32 3, %s261
        %p263 = scmp.lt.s32.totalorder %s262, 2
        %s264 = scalar_select %p263, %s262, 2
        %s265 = smul.u32 128, %s264
        %p266 = scmp.lt.s32.totalorder %s261, 2
        %s267 = scalar_select %p266, %s261, 2
        %s268 = smul.addr %s267, 8
        %s269 = scalar_lea.vmem %s1, %s268
        %s270 = smul.u32 2, %s19
        %s271 = ssub.s32 3, %s270
        %p272 = scmp.lt.s32.totalorder %s271, 2
        %s273 = scalar_select %p272, %s271, 2
        %s274 = smul.u32 128, %s273
        %s275 = smul.u32 2, %s19
        %s276 = ssub.s32 3, %s275
        %p277 = scmp.lt.s32.totalorder %s276, 2
        %s278 = scalar_select %p277, %s276, 2
        %s279 = smul.u32 128, %s278
        %v281 = vld [vmem:[%s255] sm:$0xff]
        %v282 = vld [vmem:[%s255 + $0x8] sm:$0xff]
        %v283 = vpack.c.bf16 %v282, %v281
        %v284 = vld [vmem:[#allocation2] sm:$0xf]
        %v285 = vld [vmem:[#allocation2 + $0x4] sm:$0xf]
        %v286 = vld [vmem:[#allocation2 + $0x8] sm:$0xf]
        %v287 = vld [vmem:[#allocation2 + $0xc] sm:$0xf]
        %v288 = vld [vmem:[%s3] sm:$0x1]
        %v290 = vlaneseq
        %v291 = vshrl.u32 %v290, 7
        %v292 = vsub.s32 0, %v291
        %v293 = vrot.slane %v288, %v292
        %v299 = vunpack.c.l.b16 %v284
        %v300 = vunpack.c.l.b16 %v285
        %v301 = vunpack.c.l.b16 %v286
        %v302 = vunpack.c.l.b16 %v287
        %v303 = vpack.c.b16 %v300, %v299
        %v304 = vpack.c.b16 %v302, %v301
        %vm307 = vcmask 261120
        %v309 = vsel %vm307, %v283, 0
        %311 = vmatprep.subr.bf16.mxu0 0
        %312 = vmatpush1.bf16.msra.mxu0 %v303
        %313 = vmatprep.subr.bf16.mxu0 0
        %314 = vmatpush1.bf16.msra.mxu0 %v304
        %315 = vmatprep.subr.bf16.mxu0 0
        %316 = vmatpush1.bf16.msra.mxu0 0
        %317 = vmatprep.subr.bf16.mxu0 0
        %318 = vmatpush1.bf16.msra.mxu0 0
        %319 = vmatprep.subr.bf16.mxu0 0
        %320 = vmatpush1.bf16.msra.mxu0 0
        %321 = vmatprep.subr.bf16.mxu0 0
        %322 = vmatpush1.bf16.msra.mxu0 0
        %323 = vmatprep.subr.bf16.mxu0 0
        %324 = vmatpush1.bf16.msra.mxu0 0
        %325 = vmatprep.subr.bf16.mxu0 0
        %326 = vmatpush1.bf16.msra.mxu0 0
        %327 = vmatprep.subr.bf16.mxu0 0
        %328 = vmatpush1.bf16.msra.mxu0 0
        %329 = vmatprep.subr.bf16.mxu0 0
        %330 = vmatpush1.bf16.msra.mxu0 0
        %331 = vmatprep.subr.bf16.mxu0 0
        %332 = vmatpush1.bf16.msra.mxu0 0
        %333 = vmatprep.subr.bf16.mxu0 0
        %334 = vmatpush1.bf16.msra.mxu0 0
        %335 = vmatprep.subr.bf16.mxu0 0
        %336 = vmatpush1.bf16.msra.mxu0 0
        %337 = vmatprep.subr.bf16.mxu0 0
        %338 = vmatpush1.bf16.msra.mxu0 0
        %339 = vmatprep.subr.bf16.mxu0 0
        %340 = vmatpush1.bf16.msra.mxu0 0
        %341 = vmatprep.subr.bf16.mxu0 0
        %342 = vmatpush1.bf16.msra.mxu0 0
        %343 = vmatprep.mubr.bf16.mxu0 0
        %344 = vmatmul.mubr.bf16.gmra.mrb[0].mxu0 %v309
        %v345 = vpop.f32.mrb[0].mxu0
        %v346 = vadd.f32 %v293, %v345
        %v347 = vpop.f32.mrb[0].mxu0
        %v348 = vpop.f32.mrb[0].mxu0
        %v349 = vadd.f32 %v293, %v348
        %v350 = vpop.f32.mrb[0].mxu0
        %351 = vdwg.mxu0
        %v352 = vld [vmem:[%s269] sm:$0xff]
        %v353 = vld [vmem:[%s269 + $0x8] sm:$0xff]
        %v354 = vlaneseq
        %v355 = vand.u32 %v354, 127
        %vm356 = vcmp.lt.s32.totalorder %v355, 16
        %358 = vset.pattern.permute.xlu0 0
        %359 = vperm.xlu0 %358, %v352
        %v360 = vpop.permute.xlu0 %359
        %363 = vset.pattern.permute.xlu0 0
        %364 = vperm.xlu0 %363, %v353
        %v365 = vpop.permute.xlu0 %364
        %v367 = vsel %vm356, %v360, 1.0
        %v368 = vsel %vm356, %v365, 1.0
        %v369 = vmul.f32 %v346, %v367
        %v370 = vmul.f32 %v349, %v368
        %371 = vst [vmem:[%s246] sm:$0xff] %v369
        %372 = vst [vmem:[%s246 + $0x8] sm:$0xff] %v370
        %s373 = sand.u32 %s121, 1
        %s374 = scalar_lea.sflag [#allocation4], %s373
        %s375 = sand.u32 %s121, 1
        %s376 = smul.addr %s375, 16
        %s377 = scalar_lea.vmem [#allocation5], %s376
        // Predicated region
        $region41: #{tpu_custom_call.1} parent=35 // pred_check
          %p378 = pneg %p131
        $region42: #{tpu_custom_call.1} parent=35 // pred_check_branch
          %380 = sbr.rel (%p378) target = $region44
        $region43: #{tpu_custom_call.1} parent=35 // pred_region
          %s381 = smul.u32 2, %s19
          %s382 = ssub.s32 3, %s381
          %p383 = scmp.lt.s32.totalorder %s382, 2
          %s384 = scalar_select %p383, %s382, 2
          %s385 = smul.u32 128, %s384
          %s387 = ssub.s32 256, %s385
          %388 = vsyncadd %s374, %s387
          %p389 = scmp.ne.s32.totalorder 0, %s385
          %s390 = smul.addr %s381, 128
          %s391 = scalar_lea.hbm %s4, %s390
          %s392 = smul.u32 8, %s384
          %s393 = sshll.u32 %s377, 4
          %s394 = int_to_ptr.vmem [resolvable:$true] %s393
          %s395 = sshll.u32 %s392, 4
          %399 = dma.vmem_to_hbm [thread:$0]  (%p389), %s394, %s395, %s391, %s374, 128, 128, 8
        $region44: #{tpu_custom_call.1} parent=35 // pred_fallthru
          _
      $region36: #{tpu_custom_call.1} parent=5 // pred_fallthru
        _
      %p400 = scmp.le.s32.totalorder 2, %s14
      // Predicated region
      $region45: #{tpu_custom_call.1} parent=5 // pred_check
        %p401 = pneg %p400
      $region46: #{tpu_custom_call.1} parent=5 // pred_check_branch
        %403 = sbr.rel (%p401) target = $region48
      $region47: #{tpu_custom_call.1} parent=5 // pred_region
        %s404 = ssub.s32 %s14, 2
        // Predicated region
        $region49: #{tpu_custom_call.1} parent=47 // pred_check
          %p405 = pneg %p137
        $region50: #{tpu_custom_call.1} parent=47 // pred_check_branch
          %407 = sbr.rel (%p405) target = $region52
        $region51: #{tpu_custom_call.1} parent=47 // pred_region
          %s408 = sand.u32 %s122, 1
          %s409 = scalar_lea.sflag [#allocation4], %s408
          %s410 = sand.u32 %s122, 1
          %s411 = smul.addr %s410, 16
          %s412 = scalar_lea.vmem [#allocation5], %s411
          %413 = dma.done %s409, 256
        $region52: #{tpu_custom_call.1} parent=47 // pred_fallthru
          _
      $region48: #{tpu_custom_call.1} parent=5 // pred_fallthru
        _
    $region6: #{tpu_custom_call.1} parent=1 // loop_footer
      %s18 = sadd.s32 1, %s14
    $region7: #{tpu_custom_call.1} parent=1 // loop_footer_branch
      %13 = sbr.rel target = $region3
    $region8: #{tpu_custom_call.1} parent=1 // loop_exit
      _
    %414 = vsyncpa [#allocation3], 1
    %s415 = scalar_lea.sflag [#allocation3], 1
    %416 = vsyncpa %s415, 1
    %417 = vsyncpa [#allocation4], 1
    %s418 = scalar_lea.sflag [#allocation4], 1
    %419 = vsyncpa %s418, 1

</llo_original>
